<compile_context>
chip_gen: v6e
topology: v6e:2x2x1
jax: 0.10.0
libtpu: 0.0.40
codegen_flags: <defaults>
</compile_context>

<pallas_src>
import functools

import jax
import jax.numpy as jnp
from jax.experimental import pallas as pl
from jax.experimental.pallas import tpu as pltpu


def _round_up(x, m):
    return ((x + m - 1) // m) * m


def _choose_tile(batch, tile_b):
    """Batch tile: large enough to amortize per-grid-step overhead, but keep
    >= 2 grid steps when the batch allows it (v7x has 2 TensorCores)."""
    gran = 16  # bf16-friendly sublane granularity
    tile = min(tile_b, _round_up(batch, gran))
    if tile >= batch and batch > gran:
        tile = _round_up((batch + 1) // 2, gran)
    return max(tile, gran)


def _generator_kernel(noise_ref, att_ref, w1_ref, b1_ref, w2_ref, b2_ref,
                      out_ref):
    """sigmoid(relu([noise, att] @ W1 + b1) @ W2 + b2) for one batch tile."""
    # In-kernel concat along the lane axis + f32 -> bf16 cast for the MXU.
    h = jnp.concatenate(
        (noise_ref[...].astype(jnp.bfloat16),
         att_ref[...].astype(jnp.bfloat16)),
        axis=-1)
    # First linear: single full-K (= 2*att) MXU pass, f32 accumulation.
    z1 = jnp.dot(h, w1_ref[...], preferred_element_type=jnp.float32)
    z1 = z1 + b1_ref[...]
    a1 = jnp.maximum(z1, 0.0).astype(w2_ref.dtype)          # ReLU -> bf16
    # Second linear.
    z2 = jnp.dot(a1, w2_ref[...], preferred_element_type=jnp.float32)
    z2 = z2 + b2_ref[...]
    # sigmoid(z) = 0.5 * (tanh(z/2) + 1): one EUP push, no exp overflow.
    out_ref[...] = (0.5 * jnp.tanh(0.5 * z2) + 0.5).astype(out_ref.dtype)


@functools.partial(jax.jit, static_argnames=("tile_b", "out_dtype"))
def generator_forward(noise, att, w1_t, b1, w2_t, b2, *,
                      tile_b=512, out_dtype=jnp.bfloat16):
    """Pallas implementation of Generator.forward.

    noise, att : (..., att_size)        — 2-D (B, att) or 3-D (B, T, att), f32
    w1_t       : (2*att_size, hidden)   — transposed fc1.weight, bf16 preferred
    b1         : (hidden,)              — f32
    w2_t       : (hidden, feature_size) — transposed fc2.weight, bf16 preferred
    b2         : (feature_size,)        — f32
    out_dtype  : bf16 (default, halves writeback) or f32 for exact parity.
    """
    orig_shape = att.shape
    att_size = att.shape[-1]
    if att.ndim == 3:
        noise2 = noise.reshape(-1, noise.shape[-1])
        att2 = att.reshape(-1, att_size)
    else:
        noise2, att2 = noise, att

    B = att2.shape[0]
    d_in = w1_t.shape[0]
    hidden = w1_t.shape[1]
    feat = w2_t.shape[1]

    # Weights in bf16 (no-op if already stored that way), biases in f32.
    w1 = w1_t if w1_t.dtype == jnp.bfloat16 else w1_t.astype(jnp.bfloat16)
    w2 = w2_t if w2_t.dtype == jnp.bfloat16 else w2_t.astype(jnp.bfloat16)
    b1_2d = b1.reshape(1, hidden).astype(jnp.float32)
    b2_2d = b2.reshape(1, feat).astype(jnp.float32)
    noise2 = noise2.astype(jnp.float32)
    att2 = att2.astype(jnp.float32)

    tile = _choose_tile(B, tile_b)
    grid = (pl.cdiv(B, tile),)

    out_isize = jnp.dtype(out_dtype).itemsize
    # VMEM budget: double-buffered I/O tiles + single-buffered weights + the
    # in-kernel intermediates (h, z1, a1, z2), with ~1.5x headroom for Mosaic.
    vmem_need = (
        2 * (2 * tile * att_size * 4)              # noise+att tiles (f32, x2 buf)
        + 2 * tile * feat * out_isize              # output tiles (x2 buf)
        + (d_in * hidden + hidden * feat) * 2      # bf16 weights (x1 buf)
        + (hidden + feat) * 4                      # f32 biases
        + tile * d_in * 2                          # h (bf16)
        + tile * hidden * (4 + 2)                  # z1 (f32) + a1 (bf16)
        + tile * feat * 4                          # z2 (f32)
    )
    vmem_limit = min(int(vmem_need * 1.5) + (4 << 20), 100 << 20)

    cost = pl.CostEstimate(
        flops=2 * B * (d_in * hidden + hidden * feat),
        transcendentals=B * feat,                  # one tanh per output element
        bytes_accessed=(4 * 2 * B * att_size
                        + 2 * (d_in * hidden + hidden * feat)
                        + 4 * (hidden + feat)
                        + out_isize * B * feat),
    )

    resident = dict(pipeline_mode=pl.Buffered(1))  # never-changing blocks

    out = pl.pallas_call(
        _generator_kernel,
        out_shape=jax.ShapeDtypeStruct((B, feat), out_dtype),
        grid_spec=pltpu.PrefetchScalarGridSpec(
            num_scalar_prefetch=0,
            grid=grid,
            in_specs=[
                pl.BlockSpec((tile, att_size), lambda i: (i, 0)),   # noise tile
                pl.BlockSpec((tile, att_size), lambda i: (i, 0)),   # att tile
                pl.BlockSpec((d_in, hidden), lambda i: (0, 0), **resident),
                pl.BlockSpec((1, hidden), lambda i: (0, 0), **resident),
                pl.BlockSpec((hidden, feat), lambda i: (0, 0), **resident),
                pl.BlockSpec((1, feat), lambda i: (0, 0), **resident),
            ],
            out_specs=pl.BlockSpec((tile, feat), lambda i: (i, 0)),
        ),
        compiler_params=pltpu.CompilerParams(
            dimension_semantics=("parallel",),
            vmem_limit_bytes=vmem_limit,
        ),
        cost_estimate=cost,
    )(noise2, att2, w1, b1_2d, w2, b2_2d)

    if len(orig_shape) == 3:
        out = out.reshape(orig_shape[0], orig_shape[1], feat)
    return out


def init_generator_params(key, att_size, hidden, feature_size):
    """Xavier-normal weights (stored pre-transposed [in, out] in bf16 so the
    per-call wrapper does no casting), zero f32 biases — matches __init__."""
    k1, k2 = jax.random.split(key)
    d_in = 2 * att_size
    std1 = (2.0 / (d_in + hidden)) ** 0.5
    std2 = (2.0 / (hidden + feature_size)) ** 0.5
    w1_t = (std1 * jax.random.normal(k1, (d_in, hidden), dtype=jnp.float32)
            ).astype(jnp.bfloat16)
    w2_t = (std2 * jax.random.normal(k2, (hidden, feature_size),
                                     dtype=jnp.float32)).astype(jnp.bfloat16)
    b1 = jnp.zeros((hidden,), dtype=jnp.float32)
    b2 = jnp.zeros((feature_size,), dtype=jnp.float32)
    return w1_t, b1, w2_t, b2


if __name__ == "__main__":
    # Small shapes consistent with the module's forward:
    #   att_size=64 -> concat dim 128, hidden=128 (stands in for 1024),
    #   feature_size=256 (stands in for 2048).
    ATT, HIDDEN, FEAT = 64, 128, 256
    TOL = 2e-2  # bf16 MXU inputs / bf16 output vs. f32 reference

    key = jax.random.PRNGKey(0)
    k_n2, k_a2, k_n3, k_a3, k_params = jax.random.split(key, 5)
    w1_t, b1, w2_t, b2 = init_generator_params(k_params, ATT, HIDDEN, FEAT)
    # f32 copies of the (bf16-stored) weights for the reference computation.
    w1_f32 = w1_t.astype(jnp.float32)
    w2_f32 = w2_t.astype(jnp.float32)

    # --- 2-D case: batch 256 -> two 128-row grid steps (exercises megacore),
    #     default bf16 output. ---
    B2 = 256
    noise2 = jax.random.normal(k_n2, (B2, ATT), dtype=jnp.float32)
    att2 = jax.random.normal(k_a2, (B2, ATT), dtype=jnp.float32)
    out2 = jax.block_until_ready(
        generator_forward(noise2, att2, w1_t, b1, w2_t, b2))

    h2 = jnp.concatenate((noise2, att2), axis=1)
    ref2 = jax.nn.sigmoid(jnp.maximum(h2 @ w1_f32 + b1, 0.0) @ w2_f32 + b2)
    assert out2.shape == (B2, FEAT)
    assert out2.dtype == jnp.bfloat16
    assert jnp.allclose(out2.astype(jnp.float32), ref2, atol=TOL, rtol=TOL)

    # --- 3-D case with ragged B*T (exercises partial edge blocks, no padding),
    #     f32 output for exact-dtype parity with the PyTorch module. ---
    B3, T3 = 2, 37
    noise3 = jax.random.normal(k_n3, (B3, T3, ATT), dtype=jnp.float32)
    att3 = jax.random.normal(k_a3, (B3, T3, ATT), dtype=jnp.float32)
    out3 = jax.block_until_ready(
        generator_forward(noise3, att3, w1_t, b1, w2_t, b2,
                          out_dtype=jnp.float32))

    h3 = jnp.concatenate((noise3, att3), axis=2)
    ref3 = jax.nn.sigmoid(jnp.maximum(h3 @ w1_f32 + b1, 0.0) @ w2_f32 + b2)
    assert out3.shape == (B3, T3, FEAT)
    assert out3.dtype == jnp.float32
    assert jnp.allclose(out3, ref3, atol=TOL, rtol=TOL)

    print("KERNEL_OK")
</pallas_src>

<mosaic_0001>
module attributes {stable_mosaic.version = 11 : i64} {
  func.func @_generator_kernel(%arg0: i32, %arg1: memref<128x64xf32, #tpu.memory_space<vmem>>, %arg2: memref<128x64xf32, #tpu.memory_space<vmem>>, %arg3: memref<128x128xbf16, #tpu.memory_space<vmem>>, %arg4: memref<1x128xf32, #tpu.memory_space<vmem>>, %arg5: memref<128x256xbf16, #tpu.memory_space<vmem>>, %arg6: memref<1x256xf32, #tpu.memory_space<vmem>>, %arg7: memref<128x256xbf16, #tpu.memory_space<vmem>>) attributes {dimension_semantics = [#tpu.dimension_semantics<parallel>], iteration_bounds = array<i64: 2>, scalar_prefetch = 0 : i64, scratch_operands = 0 : i64, tpu.core_type = #tpu.core_type<tc>, window_params = [{transform_indices = @transform_0, window_bounds = array<i64: 128, 64>}, {transform_indices = @transform_1, window_bounds = array<i64: 128, 64>}, {pipeline_mode = #tpu.pipeline_mode<synchronous>, transform_indices = @transform_2, window_bounds = array<i64: 128, 128>}, {pipeline_mode = #tpu.pipeline_mode<synchronous>, transform_indices = @transform_3, window_bounds = array<i64: 1, 128>}, {pipeline_mode = #tpu.pipeline_mode<synchronous>, transform_indices = @transform_4, window_bounds = array<i64: 128, 256>}, {pipeline_mode = #tpu.pipeline_mode<synchronous>, transform_indices = @transform_5, window_bounds = array<i64: 1, 256>}, {transform_indices = @transform_6, window_bounds = array<i64: 128, 256>}]} {
    %c0 = arith.constant 0 : index
    %c0_0 = arith.constant 0 : index
    %0 = vector.load %arg1[%c0, %c0_0] : memref<128x64xf32, #tpu.memory_space<vmem>>, vector<128x64xf32>
    %1 = arith.truncf %0 : vector<128x64xf32> to vector<128x64xbf16>
    %c0_1 = arith.constant 0 : index
    %c0_2 = arith.constant 0 : index
    %2 = vector.load %arg2[%c0_1, %c0_2] : memref<128x64xf32, #tpu.memory_space<vmem>>, vector<128x64xf32>
    %3 = arith.truncf %2 : vector<128x64xf32> to vector<128x64xbf16>
    %4 = tpu.concatenate %1, %3 in 1 : vector<128x64xbf16>, vector<128x64xbf16> -> vector<128x128xbf16>
    %c0_3 = arith.constant 0 : index
    %c0_4 = arith.constant 0 : index
    %5 = vector.load %arg3[%c0_3, %c0_4] : memref<128x128xbf16, #tpu.memory_space<vmem>>, vector<128x128xbf16>
    %cst = arith.constant dense<0.000000e+00> : vector<128x128xf32>
    %6 = tpu.matmul %4, %5, %cst {dimension_numbers = #tpu.dot_dimension_numbers<[1], [0], [0], [1], [0, 0, 1, 1], [], []>} : vector<128x128xbf16>, vector<128x128xbf16>, vector<128x128xf32> -> vector<128x128xf32>
    %c0_5 = arith.constant 0 : index
    %c0_6 = arith.constant 0 : index
    %7 = vector.load %arg4[%c0_5, %c0_6] : memref<1x128xf32, #tpu.memory_space<vmem>>, vector<1x128xf32>
    %8 = vector.broadcast %7 : vector<1x128xf32> to vector<128x128xf32>
    %9 = arith.addf %6, %8 : vector<128x128xf32>
    %cst_7 = arith.constant 0.000000e+00 : f32
    %10 = vector.broadcast %cst_7 : f32 to vector<128x128xf32>
    %11 = arith.maximumf %9, %10 : vector<128x128xf32>
    %12 = arith.truncf %11 : vector<128x128xf32> to vector<128x128xbf16>
    %c0_8 = arith.constant 0 : index
    %c0_9 = arith.constant 0 : index
    %13 = vector.load %arg5[%c0_8, %c0_9] : memref<128x256xbf16, #tpu.memory_space<vmem>>, vector<128x256xbf16>
    %cst_10 = arith.constant dense<0.000000e+00> : vector<128x256xf32>
    %14 = tpu.matmul %12, %13, %cst_10 {dimension_numbers = #tpu.dot_dimension_numbers<[1], [0], [0], [1], [0, 0, 1, 1], [], []>} : vector<128x128xbf16>, vector<128x256xbf16>, vector<128x256xf32> -> vector<128x256xf32>
    %c0_11 = arith.constant 0 : index
    %c0_12 = arith.constant 0 : index
    %15 = vector.load %arg6[%c0_11, %c0_12] : memref<1x256xf32, #tpu.memory_space<vmem>>, vector<1x256xf32>
    %16 = vector.broadcast %15 : vector<1x256xf32> to vector<128x256xf32>
    %17 = arith.addf %14, %16 : vector<128x256xf32>
    %cst_13 = arith.constant 5.000000e-01 : f32
    %18 = vector.broadcast %cst_13 : f32 to vector<128x256xf32>
    %19 = arith.mulf %18, %17 : vector<128x256xf32>
    %20 = math.tanh %19 : vector<128x256xf32>
    %cst_14 = arith.constant 5.000000e-01 : f32
    %21 = vector.broadcast %cst_14 : f32 to vector<128x256xf32>
    %22 = arith.mulf %21, %20 : vector<128x256xf32>
    %cst_15 = arith.constant 5.000000e-01 : f32
    %23 = vector.broadcast %cst_15 : f32 to vector<128x256xf32>
    %24 = arith.addf %22, %23 : vector<128x256xf32>
    %25 = arith.truncf %24 : vector<128x256xf32> to vector<128x256xbf16>
    %c0_16 = arith.constant 0 : index
    %c0_17 = arith.constant 0 : index
    %26 = vector.load %arg7[%c0_16, %c0_17] : memref<128x256xbf16, #tpu.memory_space<vmem>>, vector<128x256xbf16>
    tpu.vector_store %arg7[%c0_16, %c0_17], %25 {strides = array<i32>} : memref<128x256xbf16, #tpu.memory_space<vmem>>, vector<128x256xbf16>,
    return
  }
  func.func @transform_0(%arg0: i32) -> (i32, i32) {
    %c0_i32 = arith.constant 0 : i32
    %c0_i32_0 = arith.constant 0 : i32
    return %arg0, %c0_i32 : i32, i32
  }
  func.func @transform_1(%arg0: i32) -> (i32, i32) {
    %c0_i32 = arith.constant 0 : i32
    %c0_i32_0 = arith.constant 0 : i32
    return %arg0, %c0_i32 : i32, i32
  }
  func.func @transform_2(%arg0: i32) -> (i32, i32) {
    %c0_i32 = arith.constant 0 : i32
    %c0_i32_0 = arith.constant 0 : i32
    %c0_i32_1 = arith.constant 0 : i32
    return %c0_i32, %c0_i32_0 : i32, i32
  }
  func.func @transform_3(%arg0: i32) -> (i32, i32) {
    %c0_i32 = arith.constant 0 : i32
    %c0_i32_0 = arith.constant 0 : i32
    %c0_i32_1 = arith.constant 0 : i32
    return %c0_i32, %c0_i32_0 : i32, i32
  }
  func.func @transform_4(%arg0: i32) -> (i32, i32) {
    %c0_i32 = arith.constant 0 : i32
    %c0_i32_0 = arith.constant 0 : i32
    %c0_i32_1 = arith.constant 0 : i32
    return %c0_i32, %c0_i32_0 : i32, i32
  }
  func.func @transform_5(%arg0: i32) -> (i32, i32) {
    %c0_i32 = arith.constant 0 : i32
    %c0_i32_0 = arith.constant 0 : i32
    %c0_i32_1 = arith.constant 0 : i32
    return %c0_i32, %c0_i32_0 : i32, i32
  }
  func.func @transform_6(%arg0: i32) -> (i32, i32) {
    %c0_i32 = arith.constant 0 : i32
    %c0_i32_0 = arith.constant 0 : i32
    return %arg0, %c0_i32 : i32, i32
  }
}

</mosaic_0001>

<llo_original>
// kernel: generator_forward.1
$region0: #{generator_forward.1}
  #allocation0 [shape = 'u32[]', space=smem, size = 0x4, offset = 0x4, fixed_abs, tag = 'smem constant byte address 0x4 - core index']
  #allocation1 [shape = 'u32[144,128]{1,0:T(1,128)}', space=vmem, size = 0x12000, scoped, tag = 'internal scratch']
  %s0 = inlined_call_operand.vmem [shape: f32[256,64], index: 0, kind: input, shape index: {}]
  %s1 = inlined_call_operand.vmem [shape: f32[256,64], index: 1, kind: input, shape index: {}]
  %s2 = inlined_call_operand.vmem [shape: bf16[128,128], index: 2, kind: input, shape index: {}]
  %s3 = inlined_call_operand.vmem [shape: f32[1,128], index: 3, kind: input, shape index: {}]
  %s4 = inlined_call_operand.vmem [shape: bf16[128,256], index: 4, kind: input, shape index: {}]
  %s5 = inlined_call_operand.vmem [shape: f32[1,256], index: 5, kind: input, shape index: {}]
  %s6 = inlined_call_operand.hbm [shape: bf16[256,256], index: 6, kind: output, shape index: {}]
  %s7 = sld [smem:[#allocation0]]
  $region57: #{generator_forward.1} parent=0
    _
  %s9 = ssub.s32 1, %s7
  %s10 = scalar_select 0, %s9, %s7
  $region1: #{generator_forward.1} parent=0
    #allocation2 [shape = 'u8[131072]{0}', space=vmem, size = 0x20000, scoped, tag = 'output window, operand 0']
    #allocation3 [shape = 's32[2]{0}', space=sflag, size = 0x8, scoped, tag = 'scoped memory for generator_forward.1']
    %11 = vsyncpa [#allocation3], 0
    %s12 = scalar_lea.sflag [#allocation3], 1
    %13 = vsyncpa %s12, 0
    loop: start=0, step=1, limit=4
    $region2: #{generator_forward.1} parent=1 // loop_pre_header
      _
    $region3: #{generator_forward.1} parent=1 // loop_header
      %s15 = sphi 0, %s19
      %p16 = scmp.ge.s32.totalorder %s15, 4
      %s25 = sphi 0, %s27
      %s28 = sphi 0, %s25
      %s29 = sphi 0, %s28
      %s45 = sphi 0, %s29
      %s51 = sphi 0, %s53
      %s54 = sphi 0, %s51
      %s55 = sphi 0, %s54
      %s71 = sphi 0, %s55
      %s75 = sphi 0, %s75
      %s77 = sphi 0, %s75
      %s78 = sphi 0, %s77
      %s92 = sphi 0, %s78
      %s96 = sphi 0, %s96
      %s98 = sphi 0, %s96
      %s99 = sphi 0, %s98
      %s113 = sphi 0, %s99
      %s117 = sphi 0, %s117
      %s119 = sphi 0, %s117
      %s120 = sphi 0, %s119
      %s134 = sphi 0, %s120
      %s138 = sphi 0, %s138
      %s140 = sphi 0, %s138
      %s141 = sphi 0, %s140
      %s155 = sphi 0, %s141
      %s161 = sphi 0, %s163
      %s164 = sphi 0, %s161
      %s165 = sphi 0, %s164
      %s181 = sphi 0, %s165
    $region4: #{generator_forward.1} parent=1 // loop_header_branch
      %18 = sbr.rel (%p16) target = $region8
    $region5: #{generator_forward.1} parent=1 // loop_body
      %s20 = ssub.s32 %s15, 1
      %s21 = ssub.s32 %s15, 2
      %s22 = sadd.s32 %s15, 1
      %s23 = ssub.s32 %s15, %s22
      %p24 = scmp.eq.s32.totalorder %s23, 0
      %s26 = sadd.s32 %s25, 1
      %s27 = scalar_select %p24, %s25, %s26
      %p30 = pneg %p24
      %p31 = scmp.eq.s32.totalorder %s15, 1
      %p32 = por %p30, %p31
      %p33 = scmp.ne.s32.totalorder %s25, %s28
      %p34 = scmp.eq.s32.totalorder %s15, 0
      %p35 = por %p33, %p34
      %p36 = scmp.ne.s32.totalorder %s25, %s28
      %p37 = scmp.eq.s32.totalorder %s20, 1
      %p38 = por %p36, %p37
      %p39 = scmp.ne.s32.totalorder %s28, %s29
      %p40 = scmp.eq.s32.totalorder %s20, 0
      %p41 = por %p39, %p40
      %p42 = scmp.ne.s32.totalorder %s28, %s29
      %p43 = scmp.eq.s32.totalorder %s21, 1
      %p44 = por %p42, %p43
      %p46 = scmp.ne.s32.totalorder %s29, %s45
      %p47 = scmp.eq.s32.totalorder %s21, 0
      %p48 = por %p46, %p47
      %s49 = ssub.s32 %s15, %s22
      %p50 = scmp.eq.s32.totalorder %s49, 0
      %s52 = sadd.s32 %s51, 1
      %s53 = scalar_select %p50, %s51, %s52
      %p56 = pneg %p50
      %p57 = scmp.eq.s32.totalorder %s15, 1
      %p58 = por %p56, %p57
      %p59 = scmp.ne.s32.totalorder %s51, %s54
      %p60 = scmp.eq.s32.totalorder %s15, 0
      %p61 = por %p59, %p60
      %p62 = scmp.ne.s32.totalorder %s51, %s54
      %p63 = scmp.eq.s32.totalorder %s20, 1
      %p64 = por %p62, %p63
      %p65 = scmp.ne.s32.totalorder %s54, %s55
      %p66 = scmp.eq.s32.totalorder %s20, 0
      %p67 = por %p65, %p66
      %p68 = scmp.ne.s32.totalorder %s54, %s55
      %p69 = scmp.eq.s32.totalorder %s21, 1
      %p70 = por %p68, %p69
      %p72 = scmp.ne.s32.totalorder %s55, %s71
      %p73 = scmp.eq.s32.totalorder %s21, 0
      %p74 = por %p72, %p73
      %s76 = sadd.s32 %s75, 1
      %p79 = scmp.eq.s32.totalorder %s15, 1
      %p80 = scmp.ne.s32.totalorder %s75, %s77
      %p81 = scmp.eq.s32.totalorder %s15, 0
      %p82 = por %p80, %p81
      %p83 = scmp.ne.s32.totalorder %s75, %s77
      %p84 = scmp.eq.s32.totalorder %s20, 1
      %p85 = por %p83, %p84
      %p86 = scmp.ne.s32.totalorder %s77, %s78
      %p87 = scmp.eq.s32.totalorder %s20, 0
      %p88 = por %p86, %p87
      %p89 = scmp.ne.s32.totalorder %s77, %s78
      %p90 = scmp.eq.s32.totalorder %s21, 1
      %p91 = por %p89, %p90
      %p93 = scmp.ne.s32.totalorder %s78, %s92
      %p94 = scmp.eq.s32.totalorder %s21, 0
      %p95 = por %p93, %p94
      %s97 = sadd.s32 %s96, 1
      %p100 = scmp.eq.s32.totalorder %s15, 1
      %p101 = scmp.ne.s32.totalorder %s96, %s98
      %p102 = scmp.eq.s32.totalorder %s15, 0
      %p103 = por %p101, %p102
      %p104 = scmp.ne.s32.totalorder %s96, %s98
      %p105 = scmp.eq.s32.totalorder %s20, 1
      %p106 = por %p104, %p105
      %p107 = scmp.ne.s32.totalorder %s98, %s99
      %p108 = scmp.eq.s32.totalorder %s20, 0
      %p109 = por %p107, %p108
      %p110 = scmp.ne.s32.totalorder %s98, %s99
      %p111 = scmp.eq.s32.totalorder %s21, 1
      %p112 = por %p110, %p111
      %p114 = scmp.ne.s32.totalorder %s99, %s113
      %p115 = scmp.eq.s32.totalorder %s21, 0
      %p116 = por %p114, %p115
      %s118 = sadd.s32 %s117, 1
      %p121 = scmp.eq.s32.totalorder %s15, 1
      %p122 = scmp.ne.s32.totalorder %s117, %s119
      %p123 = scmp.eq.s32.totalorder %s15, 0
      %p124 = por %p122, %p123
      %p125 = scmp.ne.s32.totalorder %s117, %s119
      %p126 = scmp.eq.s32.totalorder %s20, 1
      %p127 = por %p125, %p126
      %p128 = scmp.ne.s32.totalorder %s119, %s120
      %p129 = scmp.eq.s32.totalorder %s20, 0
      %p130 = por %p128, %p129
      %p131 = scmp.ne.s32.totalorder %s119, %s120
      %p132 = scmp.eq.s32.totalorder %s21, 1
      %p133 = por %p131, %p132
      %p135 = scmp.ne.s32.totalorder %s120, %s134
      %p136 = scmp.eq.s32.totalorder %s21, 0
      %p137 = por %p135, %p136
      %s139 = sadd.s32 %s138, 1
      %p142 = scmp.eq.s32.totalorder %s15, 1
      %p143 = scmp.ne.s32.totalorder %s138, %s140
      %p144 = scmp.eq.s32.totalorder %s15, 0
      %p145 = por %p143, %p144
      %p146 = scmp.ne.s32.totalorder %s138, %s140
      %p147 = scmp.eq.s32.totalorder %s20, 1
      %p148 = por %p146, %p147
      %p149 = scmp.ne.s32.totalorder %s140, %s141
      %p150 = scmp.eq.s32.totalorder %s20, 0
      %p151 = por %p149, %p150
      %p152 = scmp.ne.s32.totalorder %s140, %s141
      %p153 = scmp.eq.s32.totalorder %s21, 1
      %p154 = por %p152, %p153
      %p156 = scmp.ne.s32.totalorder %s141, %s155
      %p157 = scmp.eq.s32.totalorder %s21, 0
      %p158 = por %p156, %p157
      %s159 = ssub.s32 %s15, %s22
      %p160 = scmp.eq.s32.totalorder %s159, 0
      %s162 = sadd.s32 %s161, 1
      %s163 = scalar_select %p160, %s161, %s162
      %p166 = pneg %p160
      %p167 = scmp.eq.s32.totalorder %s15, 1
      %p168 = por %p166, %p167
      %p169 = scmp.ne.s32.totalorder %s161, %s164
      %p170 = scmp.eq.s32.totalorder %s15, 0
      %p171 = por %p169, %p170
      %p172 = scmp.ne.s32.totalorder %s161, %s164
      %p173 = scmp.eq.s32.totalorder %s20, 1
      %p174 = por %p172, %p173
      %p175 = scmp.ne.s32.totalorder %s164, %s165
      %p176 = scmp.eq.s32.totalorder %s20, 0
      %p177 = por %p175, %p176
      %p178 = scmp.ne.s32.totalorder %s164, %s165
      %p179 = scmp.eq.s32.totalorder %s21, 1
      %p180 = por %p178, %p179
      %p182 = scmp.ne.s32.totalorder %s165, %s181
      %p183 = scmp.eq.s32.totalorder %s21, 0
      %p184 = por %p182, %p183
      %p185 = scmp.le.s32.totalorder 1, %s15
      %p186 = scmp.lt.s32.totalorder %s15, 3
      %p187 = pnand %p185, %p186
      %p188 = pneg %p187
      // Predicated region
      $region9: #{generator_forward.1} parent=5 // pred_check
        _
      $region10: #{generator_forward.1} parent=5 // pred_check_branch
        %190 = sbr.rel (%p187) target = $region12
      $region11: #{generator_forward.1} parent=5 // pred_region
        %s191 = ssub.s32 %s15, 1
        // Predicated region
        $region13: #{generator_forward.1} parent=11 // pred_check
          %p192 = pneg %p88
        $region14: #{generator_forward.1} parent=11 // pred_check_branch
          %194 = sbr.rel (%p192) target = $region16
        $region15: #{generator_forward.1} parent=11 // pred_region
          _
        $region16: #{generator_forward.1} parent=11 // pred_fallthru
          _
        // Predicated region
        $region17: #{generator_forward.1} parent=11 // pred_check
          %p195 = pneg %p109
        $region18: #{generator_forward.1} parent=11 // pred_check_branch
          %197 = sbr.rel (%p195) target = $region20
        $region19: #{generator_forward.1} parent=11 // pred_region
          _
        $region20: #{generator_forward.1} parent=11 // pred_fallthru
          _
        // Predicated region
        $region21: #{generator_forward.1} parent=11 // pred_check
          %p198 = pneg %p130
        $region22: #{generator_forward.1} parent=11 // pred_check_branch
          %200 = sbr.rel (%p198) target = $region24
        $region23: #{generator_forward.1} parent=11 // pred_region
          _
        $region24: #{generator_forward.1} parent=11 // pred_fallthru
          _
        // Predicated region
        $region25: #{generator_forward.1} parent=11 // pred_check
          %p201 = pneg %p151
        $region26: #{generator_forward.1} parent=11 // pred_check_branch
          %203 = sbr.rel (%p201) target = $region28
        $region27: #{generator_forward.1} parent=11 // pred_region
          _
        $region28: #{generator_forward.1} parent=11 // pred_fallthru
          _
      $region12: #{generator_forward.1} parent=5 // pred_fallthru
        _
      %p204 = scmp.lt.s32.totalorder %s15, 2
      // Predicated region
      $region29: #{generator_forward.1} parent=5 // pred_check
        %p205 = pneg %p204
      $region30: #{generator_forward.1} parent=5 // pred_check_branch
        %207 = sbr.rel (%p205) target = $region32
      $region31: #{generator_forward.1} parent=5 // pred_region
        // Predicated region
        $region33: #{generator_forward.1} parent=31 // pred_check
          %p208 = pneg %p35
        $region34: #{generator_forward.1} parent=31 // pred_check_branch
          %210 = sbr.rel (%p208) target = $region36
        $region35: #{generator_forward.1} parent=31 // pred_region
          %s211 = smul.u32 16, %s15
          %p212 = scmp.lt.s32.totalorder %s211, 31
          %s213 = scalar_select %p212, %s211, 31
          %s214 = smul.addr %s213, 8
          %s215 = scalar_lea.vmem %s0, %s214
          %s216 = smul.u32 16, %s15
        $region36: #{generator_forward.1} parent=31 // pred_fallthru
          _
        // Predicated region
        $region37: #{generator_forward.1} parent=31 // pred_check
          %p217 = pneg %p61
        $region38: #{generator_forward.1} parent=31 // pred_check_branch
          %219 = sbr.rel (%p217) target = $region40
        $region39: #{generator_forward.1} parent=31 // pred_region
          %s220 = smul.u32 16, %s15
          %p221 = scmp.lt.s32.totalorder %s220, 31
          %s222 = scalar_select %p221, %s220, 31
          %s223 = smul.addr %s222, 8
          %s224 = scalar_lea.vmem %s1, %s223
          %s225 = smul.u32 16, %s15
        $region40: #{generator_forward.1} parent=31 // pred_fallthru
          _
      $region32: #{generator_forward.1} parent=5 // pred_fallthru
        _
      %p226 = scmp.le.s32.totalorder 1, %s15
      %p227 = scmp.lt.s32.totalorder %s15, 3
      %p228 = pnand %p226, %p227
      %p229 = pneg %p228
      // Predicated region
      $region41: #{generator_forward.1} parent=5 // pred_check
        _
      $region42: #{generator_forward.1} parent=5 // pred_check_branch
        %231 = sbr.rel (%p228) target = $region44
      $region43: #{generator_forward.1} parent=5 // pred_region
        %s232 = ssub.s32 %s15, 1
        %s233 = smul.u32 16, %s20
        %p234 = scmp.lt.s32.totalorder %s233, 31
        %s235 = scalar_select %p234, %s233, 31
        %s236 = smul.addr %s235, 8
        %s237 = scalar_lea.vmem %s0, %s236
        %p238 = pneg %p41
        %p239 = pneg %p38
        %s240 = smul.u32 16, %s20
        %p241 = scmp.lt.s32.totalorder %s240, 31
        %s242 = scalar_select %p241, %s240, 31
        %s243 = smul.addr %s242, 8
        %s244 = scalar_lea.vmem %s1, %s243
        %p245 = pneg %p67
        %p246 = pneg %p64
        %p247 = pneg %p88
        %p248 = pneg %p85
        %p249 = pneg %p109
        %p250 = pneg %p106
        %p251 = pneg %p130
        %p252 = pneg %p127
        %p253 = pneg %p151
        %p254 = pneg %p148
        %p255 = pneg %p177
        %p256 = pneg %p174
        %s257 = sand.u32 %s164, 1
        %s258 = scalar_lea.sflag [#allocation3], %s257
        %s259 = sand.u32 %s164, 1
        %s260 = smul.addr %s259, 128
        %s261 = scalar_lea.vmem [#allocation2], %s260
        %s262 = smul.u32 16, %s20
        %p263 = scmp.lt.s32.totalorder %s262, 31
        %s264 = scalar_select %p263, %s262, 31
        %s265 = smul.addr %s264, 8
        %s266 = scalar_lea.vmem %s0, %s265
        %s267 = smul.u32 16, %s20
        %s268 = smul.u32 16, %s20
        %p269 = scmp.lt.s32.totalorder %s268, 31
        %s270 = scalar_select %p269, %s268, 31
        %s271 = smul.addr %s270, 8
        %s272 = scalar_lea.vmem %s1, %s271
        %s273 = smul.u32 16, %s20
        %s274 = smul.u32 16, %s20
        %v276 = vld [vmem:[%s266] sm:$0xff]
        %v277 = vld [vmem:[%s266 + $0x8] sm:$0xff]
        %v278 = vld [vmem:[%s266 + $0x10] sm:$0xff]
        %v279 = vld [vmem:[%s266 + $0x18] sm:$0xff]
        %v280 = vld [vmem:[%s266 + $0x20] sm:$0xff]
        %v281 = vld [vmem:[%s266 + $0x28] sm:$0xff]
        %v282 = vld [vmem:[%s266 + $0x30] sm:$0xff]
        %v283 = vld [vmem:[%s266 + $0x38] sm:$0xff]
        %v284 = vld [vmem:[%s266 + $0x40] sm:$0xff]
        %v285 = vld [vmem:[%s266 + $0x48] sm:$0xff]
        %v286 = vld [vmem:[%s266 + $0x50] sm:$0xff]
        %v287 = vld [vmem:[%s266 + $0x58] sm:$0xff]
        %v288 = vld [vmem:[%s266 + $0x60] sm:$0xff]
        %v289 = vld [vmem:[%s266 + $0x68] sm:$0xff]
        %v290 = vld [vmem:[%s266 + $0x70] sm:$0xff]
        %v291 = vld [vmem:[%s266 + $0x78] sm:$0xff]
        %v292 = vpack.c.bf16 %v277, %v276
        %v293 = vpack.c.bf16 %v279, %v278
        %v294 = vpack.c.bf16 %v281, %v280
        %v295 = vpack.c.bf16 %v283, %v282
        %v296 = vpack.c.bf16 %v285, %v284
        %v297 = vpack.c.bf16 %v287, %v286
        %v298 = vpack.c.bf16 %v289, %v288
        %v299 = vpack.c.bf16 %v291, %v290
        %v300 = vld [vmem:[%s272] sm:$0xff]
        %v301 = vld [vmem:[%s272 + $0x8] sm:$0xff]
        %v302 = vld [vmem:[%s272 + $0x10] sm:$0xff]
        %v303 = vld [vmem:[%s272 + $0x18] sm:$0xff]
        %v304 = vld [vmem:[%s272 + $0x20] sm:$0xff]
        %v305 = vld [vmem:[%s272 + $0x28] sm:$0xff]
        %v306 = vld [vmem:[%s272 + $0x30] sm:$0xff]
        %v307 = vld [vmem:[%s272 + $0x38] sm:$0xff]
        %v308 = vld [vmem:[%s272 + $0x40] sm:$0xff]
        %v309 = vld [vmem:[%s272 + $0x48] sm:$0xff]
        %v310 = vld [vmem:[%s272 + $0x50] sm:$0xff]
        %v311 = vld [vmem:[%s272 + $0x58] sm:$0xff]
        %v312 = vld [vmem:[%s272 + $0x60] sm:$0xff]
        %v313 = vld [vmem:[%s272 + $0x68] sm:$0xff]
        %v314 = vld [vmem:[%s272 + $0x70] sm:$0xff]
        %v315 = vld [vmem:[%s272 + $0x78] sm:$0xff]
        %v316 = vpack.c.bf16 %v301, %v300
        %v317 = vpack.c.bf16 %v303, %v302
        %v318 = vpack.c.bf16 %v305, %v304
        %v319 = vpack.c.bf16 %v307, %v306
        %v320 = vpack.c.bf16 %v309, %v308
        %v321 = vpack.c.bf16 %v311, %v310
        %v322 = vpack.c.bf16 %v313, %v312
        %v323 = vpack.c.bf16 %v315, %v314
        %332 = vrot.lane.b32.xlu0 %v316, 64
        %v333 = vpop.permute.xlu0 %332
        %334 = vrot.lane.b32.xlu0 %v317, 64
        %v335 = vpop.permute.xlu0 %334
        %336 = vrot.lane.b32.xlu0 %v318, 64
        %v337 = vpop.permute.xlu0 %336
        %338 = vrot.lane.b32.xlu0 %v319, 64
        %v339 = vpop.permute.xlu0 %338
        %340 = vrot.lane.b32.xlu0 %v320, 64
        %v341 = vpop.permute.xlu0 %340
        %342 = vrot.lane.b32.xlu0 %v321, 64
        %v343 = vpop.permute.xlu0 %342
        %344 = vrot.lane.b32.xlu0 %v322, 64
        %v345 = vpop.permute.xlu0 %344
        %346 = vrot.lane.b32.xlu0 %v323, 64
        %v347 = vpop.permute.xlu0 %346
        %vm348 = vcmask 523264
        %v351 = vsel %vm348, %v292, %v333
        %v355 = vsel %vm348, %v293, %v335
        %v359 = vsel %vm348, %v294, %v337
        %v363 = vsel %vm348, %v295, %v339
        %v367 = vsel %vm348, %v296, %v341
        %v371 = vsel %vm348, %v297, %v343
        %v375 = vsel %vm348, %v298, %v345
        %v379 = vsel %vm348, %v299, %v347
        %v381 = vld [vmem:[%s2] sm:$0xf]
        %v382 = vld [vmem:[%s2 + $0x4] sm:$0xf]
        %v383 = vld [vmem:[%s2 + $0x8] sm:$0xf]
        %v384 = vld [vmem:[%s2 + $0xc] sm:$0xf]
        %v385 = vld [vmem:[%s2 + $0x10] sm:$0xf]
        %v386 = vld [vmem:[%s2 + $0x14] sm:$0xf]
        %v387 = vld [vmem:[%s2 + $0x18] sm:$0xf]
        %v388 = vld [vmem:[%s2 + $0x1c] sm:$0xf]
        %v389 = vld [vmem:[%s2 + $0x20] sm:$0xf]
        %v390 = vld [vmem:[%s2 + $0x24] sm:$0xf]
        %v391 = vld [vmem:[%s2 + $0x28] sm:$0xf]
        %v392 = vld [vmem:[%s2 + $0x2c] sm:$0xf]
        %v393 = vld [vmem:[%s2 + $0x30] sm:$0xf]
        %v394 = vld [vmem:[%s2 + $0x34] sm:$0xf]
        %v395 = vld [vmem:[%s2 + $0x38] sm:$0xf]
        %v396 = vld [vmem:[%s2 + $0x3c] sm:$0xf]
        %v397 = vld [vmem:[%s3] sm:$0x1]
        %v399 = vlaneseq
        %v400 = vshrl.u32 %v399, 7
        %v401 = vsub.s32 0, %v400
        %v402 = vrot.slane %v397, %v401
        %v420 = vunpack.c.l.b16 %v381
        %v421 = vunpack.c.l.b16 %v382
        %v422 = vunpack.c.l.b16 %v383
        %v423 = vunpack.c.l.b16 %v384
        %v424 = vunpack.c.l.b16 %v385
        %v425 = vunpack.c.l.b16 %v386
        %v426 = vunpack.c.l.b16 %v387
        %v427 = vunpack.c.l.b16 %v388
        %v428 = vunpack.c.l.b16 %v389
        %v429 = vunpack.c.l.b16 %v390
        %v430 = vunpack.c.l.b16 %v391
        %v431 = vunpack.c.l.b16 %v392
        %v432 = vunpack.c.l.b16 %v393
        %v433 = vunpack.c.l.b16 %v394
        %v434 = vunpack.c.l.b16 %v395
        %v435 = vunpack.c.l.b16 %v396
        %v436 = vpack.c.b16 %v421, %v420
        %v437 = vpack.c.b16 %v423, %v422
        %v438 = vpack.c.b16 %v425, %v424
        %v439 = vpack.c.b16 %v427, %v426
        %v440 = vpack.c.b16 %v429, %v428
        %v441 = vpack.c.b16 %v431, %v430
        %v442 = vpack.c.b16 %v433, %v432
        %v443 = vpack.c.b16 %v435, %v434
        %452 = vmatprep.subr.bf16.mxu0 0
        %453 = vmatpush1.bf16.msra.mxu0 %v443
        %454 = vmatprep.subr.bf16.mxu0 0
        %455 = vmatpush1.bf16.msra.mxu0 %v442
        %456 = vmatprep.subr.bf16.mxu0 0
        %457 = vmatpush1.bf16.msra.mxu0 %v441
        %458 = vmatprep.subr.bf16.mxu0 0
        %459 = vmatpush1.bf16.msra.mxu0 %v440
        %460 = vmatprep.subr.bf16.mxu0 0
        %461 = vmatpush1.bf16.msra.mxu0 %v439
        %462 = vmatprep.subr.bf16.mxu0 0
        %463 = vmatpush1.bf16.msra.mxu0 %v438
        %464 = vmatprep.subr.bf16.mxu0 0
        %465 = vmatpush1.bf16.msra.mxu0 %v437
        %466 = vmatprep.subr.bf16.mxu0 0
        %467 = vmatpush1.bf16.msra.mxu0 %v436
        %468 = vmatprep.subr.bf16.mxu0 0
        %469 = vmatpush2.bf16.msra.mxu0 0
        %470 = vmatprep.subr.bf16.mxu0 0
        %471 = vmatpush2.bf16.msra.mxu0 0
        %472 = vmatprep.subr.bf16.mxu0 0
        %473 = vmatpush2.bf16.msra.mxu0 0
        %474 = vmatprep.subr.bf16.mxu0 0
        %475 = vmatpush2.bf16.msra.mxu0 0
        %476 = vmatprep.subr.bf16.mxu0 0
        %477 = vmatpush2.bf16.msra.mxu0 0
        %478 = vmatprep.subr.bf16.mxu0 0
        %479 = vmatpush2.bf16.msra.mxu0 0
        %480 = vmatprep.subr.bf16.mxu0 0
        %481 = vmatpush2.bf16.msra.mxu0 0
        %482 = vmatprep.subr.bf16.mxu0 0
        %483 = vmatpush2.bf16.msra.mxu0 0
        %484 = vmatprep.mubr.bf16.mxu0 0
        %485 = vmatmul.mubr.bf16.gmra.mxu0 %v351
        %v486 = vpop.f32.mrf.mxu0
        %v487 = vadd.f32 %v402, %v486
        %v488 = vpop.f32.mrf.mxu0
        %v489 = vpop.f32.mrf.mxu0
        %v490 = vadd.f32 %v402, %v489
        %v491 = vpop.f32.mrf.mxu0
        %492 = vmatprep.mubr.bf16.mxu0 0
        %493 = vmatmul.mubr.bf16.gmra.mxu0 %v355
        %v494 = vpop.f32.mrf.mxu0
        %v495 = vadd.f32 %v402, %v494
        %v496 = vpop.f32.mrf.mxu0
        %v497 = vpop.f32.mrf.mxu0
        %v498 = vadd.f32 %v402, %v497
        %v499 = vpop.f32.mrf.mxu0
        %500 = vmatprep.mubr.bf16.mxu0 0
        %501 = vmatmul.mubr.bf16.gmra.mxu0 %v359
        %v502 = vpop.f32.mrf.mxu0
        %v503 = vadd.f32 %v402, %v502
        %v504 = vpop.f32.mrf.mxu0
        %v505 = vpop.f32.mrf.mxu0
        %v506 = vadd.f32 %v402, %v505
        %v507 = vpop.f32.mrf.mxu0
        %508 = vmatprep.mubr.bf16.mxu0 0
        %509 = vmatmul.mubr.bf16.gmra.mxu0 %v363
        %v510 = vpop.f32.mrf.mxu0
        %v511 = vadd.f32 %v402, %v510
        %v512 = vpop.f32.mrf.mxu0
        %v513 = vpop.f32.mrf.mxu0
        %v514 = vadd.f32 %v402, %v513
        %v515 = vpop.f32.mrf.mxu0
        %516 = vmatprep.mubr.bf16.mxu0 0
        %517 = vmatmul.mubr.bf16.gmra.mxu0 %v367
        %v518 = vpop.f32.mrf.mxu0
        %v519 = vadd.f32 %v402, %v518
        %v520 = vpop.f32.mrf.mxu0
        %v521 = vpop.f32.mrf.mxu0
        %v522 = vadd.f32 %v402, %v521
        %v523 = vpop.f32.mrf.mxu0
        %524 = vmatprep.mubr.bf16.mxu0 0
        %525 = vmatmul.mubr.bf16.gmra.mxu0 %v371
        %v526 = vpop.f32.mrf.mxu0
        %v527 = vadd.f32 %v402, %v526
        %v528 = vpop.f32.mrf.mxu0
        %v529 = vpop.f32.mrf.mxu0
        %v530 = vadd.f32 %v402, %v529
        %v531 = vpop.f32.mrf.mxu0
        %532 = vmatprep.mubr.bf16.mxu0 0
        %533 = vmatmul.mubr.bf16.gmra.mxu0 %v375
        %v534 = vpop.f32.mrf.mxu0
        %v535 = vadd.f32 %v402, %v534
        %v536 = vpop.f32.mrf.mxu0
        %v537 = vpop.f32.mrf.mxu0
        %v538 = vadd.f32 %v402, %v537
        %v539 = vpop.f32.mrf.mxu0
        %540 = vmatprep.mubr.bf16.mxu0 0
        %541 = vmatmul.mubr.bf16.gmra.mxu0 %v379
        %v542 = vpop.f32.mrf.mxu0
        %v543 = vadd.f32 %v402, %v542
        %v544 = vpop.f32.mrf.mxu0
        %v545 = vpop.f32.mrf.mxu0
        %v546 = vadd.f32 %v402, %v545
        %v547 = vpop.f32.mrf.mxu0
        %548 = vdwg.mxu0
        %v549 = vmax.f32 %v487, 0.0
        %v550 = vmax.f32 %v490, 0.0
        %v551 = vmax.f32 %v495, 0.0
        %v552 = vmax.f32 %v498, 0.0
        %v553 = vmax.f32 %v503, 0.0
        %v554 = vmax.f32 %v506, 0.0
        %v555 = vmax.f32 %v511, 0.0
        %v556 = vmax.f32 %v514, 0.0
        %v557 = vmax.f32 %v519, 0.0
        %v558 = vmax.f32 %v522, 0.0
        %v559 = vmax.f32 %v527, 0.0
        %v560 = vmax.f32 %v530, 0.0
        %v561 = vmax.f32 %v535, 0.0
        %v562 = vmax.f32 %v538, 0.0
        %v563 = vmax.f32 %v543, 0.0
        %v564 = vmax.f32 %v546, 0.0
        %v565 = vpack.c.bf16 %v550, %v549
        %v566 = vpack.c.bf16 %v552, %v551
        %v567 = vpack.c.bf16 %v554, %v553
        %v568 = vpack.c.bf16 %v556, %v555
        %v569 = vpack.c.bf16 %v558, %v557
        %v570 = vpack.c.bf16 %v560, %v559
        %v571 = vpack.c.bf16 %v562, %v561
        %v572 = vpack.c.bf16 %v564, %v563
        %v573 = vld [vmem:[%s4] sm:$0xff]
        %v574 = vld [vmem:[%s4 + $0x8] sm:$0xff]
        %v575 = vld [vmem:[%s4 + $0x10] sm:$0xff]
        %v576 = vld [vmem:[%s4 + $0x18] sm:$0xff]
        %v577 = vld [vmem:[%s4 + $0x20] sm:$0xff]
        %v578 = vld [vmem:[%s4 + $0x28] sm:$0xff]
        %v579 = vld [vmem:[%s4 + $0x30] sm:$0xff]
        %v580 = vld [vmem:[%s4 + $0x38] sm:$0xff]
        %v581 = vld [vmem:[%s4 + $0x40] sm:$0xff]
        %v582 = vld [vmem:[%s4 + $0x48] sm:$0xff]
        %v583 = vld [vmem:[%s4 + $0x50] sm:$0xff]
        %v584 = vld [vmem:[%s4 + $0x58] sm:$0xff]
        %v585 = vld [vmem:[%s4 + $0x60] sm:$0xff]
        %v586 = vld [vmem:[%s4 + $0x68] sm:$0xff]
        %v587 = vld [vmem:[%s4 + $0x70] sm:$0xff]
        %v588 = vld [vmem:[%s4 + $0x78] sm:$0xff]
        %v589 = vld [vmem:[%s5] sm:$0x3]
        %v591 = vlaneseq
        %v592 = vshrl.u32 %v591, 7
        %v593 = vsub.s32 0, %v592
        %v594 = vrot.slane %v589, %v593
        %v595 = vlaneseq
        %v596 = vshrl.u32 %v595, 7
        %v597 = vsub.s32 1, %v596
        %v598 = vrot.slane %v589, %v597
        %v617 = vunpack.c.l.b16 %v573
        %v618 = vunpack.c.h.b16 %v573
        %v619 = vunpack.c.l.b16 %v574
        %v620 = vunpack.c.h.b16 %v574
        %v621 = vunpack.c.l.b16 %v575
        %v622 = vunpack.c.h.b16 %v575
        %v623 = vunpack.c.l.b16 %v576
        %v624 = vunpack.c.h.b16 %v576
        %v625 = vunpack.c.l.b16 %v577
        %v626 = vunpack.c.h.b16 %v577
        %v627 = vunpack.c.l.b16 %v578
        %v628 = vunpack.c.h.b16 %v578
        %v629 = vunpack.c.l.b16 %v579
        %v630 = vunpack.c.h.b16 %v579
        %v631 = vunpack.c.l.b16 %v580
        %v632 = vunpack.c.h.b16 %v580
        %v633 = vunpack.c.l.b16 %v581
        %v634 = vunpack.c.h.b16 %v581
        %v635 = vunpack.c.l.b16 %v582
        %v636 = vunpack.c.h.b16 %v582
        %v637 = vunpack.c.l.b16 %v583
        %v638 = vunpack.c.h.b16 %v583
        %v639 = vunpack.c.l.b16 %v584
        %v640 = vunpack.c.h.b16 %v584
        %v641 = vunpack.c.l.b16 %v585
        %v642 = vunpack.c.h.b16 %v585
        %v643 = vunpack.c.l.b16 %v586
        %v644 = vunpack.c.h.b16 %v586
        %v645 = vunpack.c.l.b16 %v587
        %v646 = vunpack.c.h.b16 %v587
        %v647 = vunpack.c.l.b16 %v588
        %v648 = vunpack.c.h.b16 %v588
        %v649 = vpack.c.b16 %v619, %v617
        %v650 = vpack.c.b16 %v620, %v618
        %v651 = vpack.c.b16 %v623, %v621
        %v652 = vpack.c.b16 %v624, %v622
        %v653 = vpack.c.b16 %v627, %v625
        %v654 = vpack.c.b16 %v628, %v626
        %v655 = vpack.c.b16 %v631, %v629
        %v656 = vpack.c.b16 %v632, %v630
        %v657 = vpack.c.b16 %v635, %v633
        %v658 = vpack.c.b16 %v636, %v634
        %v659 = vpack.c.b16 %v639, %v637
        %v660 = vpack.c.b16 %v640, %v638
        %v661 = vpack.c.b16 %v643, %v641
        %v662 = vpack.c.b16 %v644, %v642
        %v663 = vpack.c.b16 %v647, %v645
        %v664 = vpack.c.b16 %v648, %v646
        %681 = vmatprep.subr.bf16.mxu0 %v664
        %682 = vmatpush1.bf16.msra.mxu0 %v663
        %683 = vmatprep.subr.bf16.mxu0 %v662
        %684 = vmatpush1.bf16.msra.mxu0 %v661
        %685 = vmatprep.subr.bf16.mxu0 %v660
        %686 = vmatpush1.bf16.msra.mxu0 %v659
        %687 = vmatprep.subr.bf16.mxu0 %v658
        %688 = vmatpush1.bf16.msra.mxu0 %v657
        %689 = vmatprep.subr.bf16.mxu0 %v656
        %690 = vmatpush1.bf16.msra.mxu0 %v655
        %691 = vmatprep.subr.bf16.mxu0 %v654
        %692 = vmatpush1.bf16.msra.mxu0 %v653
        %693 = vmatprep.subr.bf16.mxu0 %v652
        %694 = vmatpush1.bf16.msra.mxu0 %v651
        %695 = vmatprep.subr.bf16.mxu0 %v650
        %696 = vmatpush1.bf16.msra.mxu0 %v649
        %697 = vmatprep.subr.bf16.mxu0 0
        %698 = vmatpush2.bf16.msra.mxu0 0
        %699 = vmatprep.subr.bf16.mxu0 0
        %700 = vmatpush2.bf16.msra.mxu0 0
        %701 = vmatprep.subr.bf16.mxu0 0
        %702 = vmatpush2.bf16.msra.mxu0 0
        %703 = vmatprep.subr.bf16.mxu0 0
        %704 = vmatpush2.bf16.msra.mxu0 0
        %705 = vmatprep.subr.bf16.mxu0 0
        %706 = vmatpush2.bf16.msra.mxu0 0
        %707 = vmatprep.subr.bf16.mxu0 0
        %708 = vmatpush2.bf16.msra.mxu0 0
        %709 = vmatprep.subr.bf16.mxu0 0
        %710 = vmatpush2.bf16.msra.mxu0 0
        %711 = vmatprep.subr.bf16.mxu0 0
        %712 = vmatpush2.bf16.msra.mxu0 0
        %713 = vmatprep.mubr.bf16.mxu0 0
        %714 = vmatmul.mubr.bf16.gmra.mxu0 %v565
        %v715 = vpop.f32.mrf.mxu0
        %v716 = vadd.f32 %v594, %v715
        %v717 = vpop.f32.mrf.mxu0
        %v718 = vadd.f32 %v598, %v717
        %v719 = vpop.f32.mrf.mxu0
        %v720 = vadd.f32 %v594, %v719
        %v721 = vpop.f32.mrf.mxu0
        %v722 = vadd.f32 %v598, %v721
        %723 = vmatprep.mubr.bf16.mxu0 0
        %724 = vmatmul.mubr.bf16.gmra.mxu0 %v566
        %v725 = vpop.f32.mrf.mxu0
        %v726 = vadd.f32 %v594, %v725
        %v727 = vpop.f32.mrf.mxu0
        %v728 = vadd.f32 %v598, %v727
        %v729 = vpop.f32.mrf.mxu0
        %v730 = vadd.f32 %v594, %v729
        %v731 = vpop.f32.mrf.mxu0
        %v732 = vadd.f32 %v598, %v731
        %733 = vmatprep.mubr.bf16.mxu0 0
        %734 = vmatmul.mubr.bf16.gmra.mxu0 %v567
        %v735 = vpop.f32.mrf.mxu0
        %v736 = vadd.f32 %v594, %v735
        %v737 = vpop.f32.mrf.mxu0
        %v738 = vadd.f32 %v598, %v737
        %v739 = vpop.f32.mrf.mxu0
        %v740 = vadd.f32 %v594, %v739
        %v741 = vpop.f32.mrf.mxu0
        %v742 = vadd.f32 %v598, %v741
        %743 = vmatprep.mubr.bf16.mxu0 0
        %744 = vmatmul.mubr.bf16.gmra.mxu0 %v568
        %v745 = vpop.f32.mrf.mxu0
        %v746 = vadd.f32 %v594, %v745
        %v747 = vpop.f32.mrf.mxu0
        %v748 = vadd.f32 %v598, %v747
        %v749 = vpop.f32.mrf.mxu0
        %v750 = vadd.f32 %v594, %v749
        %v751 = vpop.f32.mrf.mxu0
        %v752 = vadd.f32 %v598, %v751
        %753 = vmatprep.mubr.bf16.mxu0 0
        %754 = vmatmul.mubr.bf16.gmra.mxu0 %v569
        %v755 = vpop.f32.mrf.mxu0
        %v756 = vadd.f32 %v594, %v755
        %v757 = vpop.f32.mrf.mxu0
        %v758 = vadd.f32 %v598, %v757
        %v759 = vpop.f32.mrf.mxu0
        %v760 = vadd.f32 %v594, %v759
        %v761 = vpop.f32.mrf.mxu0
        %v762 = vadd.f32 %v598, %v761
        %763 = vmatprep.mubr.bf16.mxu0 0
        %764 = vmatmul.mubr.bf16.gmra.mxu0 %v570
        %v765 = vpop.f32.mrf.mxu0
        %v766 = vadd.f32 %v594, %v765
        %v767 = vpop.f32.mrf.mxu0
        %v768 = vadd.f32 %v598, %v767
        %v769 = vpop.f32.mrf.mxu0
        %v770 = vadd.f32 %v594, %v769
        %v771 = vpop.f32.mrf.mxu0
        %v772 = vadd.f32 %v598, %v771
        %773 = vmatprep.mubr.bf16.mxu0 0
        %774 = vmatmul.mubr.bf16.gmra.mxu0 %v571
        %v775 = vpop.f32.mrf.mxu0
        %v776 = vadd.f32 %v594, %v775
        %v777 = vpop.f32.mrf.mxu0
        %v778 = vadd.f32 %v598, %v777
        %v779 = vpop.f32.mrf.mxu0
        %v780 = vadd.f32 %v594, %v779
        %v781 = vpop.f32.mrf.mxu0
        %v782 = vadd.f32 %v598, %v781
        %783 = vmatprep.mubr.bf16.mxu0 0
        %784 = vmatmul.mubr.bf16.gmra.mxu0 %v572
        %v785 = vpop.f32.mrf.mxu0
        %v786 = vadd.f32 %v594, %v785
        %v787 = vpop.f32.mrf.mxu0
        %v788 = vadd.f32 %v598, %v787
        %v789 = vpop.f32.mrf.mxu0
        %v790 = vadd.f32 %v594, %v789
        %v791 = vpop.f32.mrf.mxu0
        %v792 = vadd.f32 %v598, %v791
        %793 = vdwg.mxu0
        %v794 = vmul.f32 %v716, 0.5
        %v795 = vmul.f32 %v718, 0.5
        %v796 = vmul.f32 %v720, 0.5
        %v797 = vmul.f32 %v722, 0.5
        %v798 = vmul.f32 %v726, 0.5
        %v799 = vmul.f32 %v728, 0.5
        %v800 = vmul.f32 %v730, 0.5
        %v801 = vmul.f32 %v732, 0.5
        %v802 = vmul.f32 %v736, 0.5
        %v803 = vmul.f32 %v738, 0.5
        %v804 = vmul.f32 %v740, 0.5
        %v805 = vmul.f32 %v742, 0.5
        %v806 = vmul.f32 %v746, 0.5
        %v807 = vmul.f32 %v748, 0.5
        %v808 = vmul.f32 %v750, 0.5
        %v809 = vmul.f32 %v752, 0.5
        %v810 = vmul.f32 %v756, 0.5
        %v811 = vmul.f32 %v758, 0.5
        %v812 = vmul.f32 %v760, 0.5
        %v813 = vmul.f32 %v762, 0.5
        %v814 = vmul.f32 %v766, 0.5
        %v815 = vmul.f32 %v768, 0.5
        %v816 = vmul.f32 %v770, 0.5
        %v817 = vmul.f32 %v772, 0.5
        %v818 = vmul.f32 %v776, 0.5
        %v819 = vmul.f32 %v778, 0.5
        %v820 = vmul.f32 %v780, 0.5
        %v821 = vmul.f32 %v782, 0.5
        %v822 = vmul.f32 %v786, 0.5
        %v823 = vmul.f32 %v788, 0.5
        %v824 = vmul.f32 %v790, 0.5
        %v825 = vmul.f32 %v792, 0.5
        %v826 = vtanh.pop %v794
        %v827 = vtanh.pop %v795
        %v828 = vtanh.pop %v796
        %v829 = vtanh.pop %v797
        %v830 = vtanh.pop %v798
        %v831 = vtanh.pop %v799
        %v832 = vtanh.pop %v800
        %v833 = vtanh.pop %v801
        %v834 = vtanh.pop %v802
        %v835 = vtanh.pop %v803
        %v836 = vtanh.pop %v804
        %v837 = vtanh.pop %v805
        %v838 = vtanh.pop %v806
        %v839 = vtanh.pop %v807
        %v840 = vtanh.pop %v808
        %v841 = vtanh.pop %v809
        %v842 = vtanh.pop %v810
        %v843 = vtanh.pop %v811
        %v844 = vtanh.pop %v812
        %v845 = vtanh.pop %v813
        %v846 = vtanh.pop %v814
        %v847 = vtanh.pop %v815
        %v848 = vtanh.pop %v816
        %v849 = vtanh.pop %v817
        %v850 = vtanh.pop %v818
        %v851 = vtanh.pop %v819
        %v852 = vtanh.pop %v820
        %v853 = vtanh.pop %v821
        %v854 = vtanh.pop %v822
        %v855 = vtanh.pop %v823
        %v856 = vtanh.pop %v824
        %v857 = vtanh.pop %v825
        %v858 = vmul.f32 %v826, 0.5
        %v859 = vmul.f32 %v827, 0.5
        %v860 = vmul.f32 %v828, 0.5
        %v861 = vmul.f32 %v829, 0.5
        %v862 = vmul.f32 %v830, 0.5
        %v863 = vmul.f32 %v831, 0.5
        %v864 = vmul.f32 %v832, 0.5
        %v865 = vmul.f32 %v833, 0.5
        %v866 = vmul.f32 %v834, 0.5
        %v867 = vmul.f32 %v835, 0.5
        %v868 = vmul.f32 %v836, 0.5
        %v869 = vmul.f32 %v837, 0.5
        %v870 = vmul.f32 %v838, 0.5
        %v871 = vmul.f32 %v839, 0.5
        %v872 = vmul.f32 %v840, 0.5
        %v873 = vmul.f32 %v841, 0.5
        %v874 = vmul.f32 %v842, 0.5
        %v875 = vmul.f32 %v843, 0.5
        %v876 = vmul.f32 %v844, 0.5
        %v877 = vmul.f32 %v845, 0.5
        %v878 = vmul.f32 %v846, 0.5
        %v879 = vmul.f32 %v847, 0.5
        %v880 = vmul.f32 %v848, 0.5
        %v881 = vmul.f32 %v849, 0.5
        %v882 = vmul.f32 %v850, 0.5
        %v883 = vmul.f32 %v851, 0.5
        %v884 = vmul.f32 %v852, 0.5
        %v885 = vmul.f32 %v853, 0.5
        %v886 = vmul.f32 %v854, 0.5
        %v887 = vmul.f32 %v855, 0.5
        %v888 = vmul.f32 %v856, 0.5
        %v889 = vmul.f32 %v857, 0.5
        %v890 = vadd.f32 %v858, 0.5
        %v891 = vadd.f32 %v859, 0.5
        %v892 = vadd.f32 %v860, 0.5
        %v893 = vadd.f32 %v861, 0.5
        %v894 = vadd.f32 %v862, 0.5
        %v895 = vadd.f32 %v863, 0.5
        %v896 = vadd.f32 %v864, 0.5
        %v897 = vadd.f32 %v865, 0.5
        %v898 = vadd.f32 %v866, 0.5
        %v899 = vadd.f32 %v867, 0.5
        %v900 = vadd.f32 %v868, 0.5
        %v901 = vadd.f32 %v869, 0.5
        %v902 = vadd.f32 %v870, 0.5
        %v903 = vadd.f32 %v871, 0.5
        %v904 = vadd.f32 %v872, 0.5
        %v905 = vadd.f32 %v873, 0.5
        %v906 = vadd.f32 %v874, 0.5
        %v907 = vadd.f32 %v875, 0.5
        %v908 = vadd.f32 %v876, 0.5
        %v909 = vadd.f32 %v877, 0.5
        %v910 = vadd.f32 %v878, 0.5
        %v911 = vadd.f32 %v879, 0.5
        %v912 = vadd.f32 %v880, 0.5
        %v913 = vadd.f32 %v881, 0.5
        %v914 = vadd.f32 %v882, 0.5
        %v915 = vadd.f32 %v883, 0.5
        %v916 = vadd.f32 %v884, 0.5
        %v917 = vadd.f32 %v885, 0.5
        %v918 = vadd.f32 %v886, 0.5
        %v919 = vadd.f32 %v887, 0.5
        %v920 = vadd.f32 %v888, 0.5
        %v921 = vadd.f32 %v889, 0.5
        %v922 = vpack.c.bf16 %v892, %v890
        %v923 = vpack.c.bf16 %v893, %v891
        %v924 = vpack.c.bf16 %v896, %v894
        %v925 = vpack.c.bf16 %v897, %v895
        %v926 = vpack.c.bf16 %v900, %v898
        %v927 = vpack.c.bf16 %v901, %v899
        %v928 = vpack.c.bf16 %v904, %v902
        %v929 = vpack.c.bf16 %v905, %v903
        %v930 = vpack.c.bf16 %v908, %v906
        %v931 = vpack.c.bf16 %v909, %v907
        %v932 = vpack.c.bf16 %v912, %v910
        %v933 = vpack.c.bf16 %v913, %v911
        %v934 = vpack.c.bf16 %v916, %v914
        %v935 = vpack.c.bf16 %v917, %v915
        %v936 = vpack.c.bf16 %v920, %v918
        %v937 = vpack.c.bf16 %v921, %v919
        %v954 = vunpack.c.l.b16 %v922
        %v955 = vunpack.c.l.b16 %v923
        %v956 = vunpack.c.h.b16 %v922
        %v957 = vunpack.c.h.b16 %v923
        %v958 = vunpack.c.l.b16 %v924
        %v959 = vunpack.c.l.b16 %v925
        %v960 = vunpack.c.h.b16 %v924
        %v961 = vunpack.c.h.b16 %v925
        %v962 = vunpack.c.l.b16 %v926
        %v963 = vunpack.c.l.b16 %v927
        %v964 = vunpack.c.h.b16 %v926
        %v965 = vunpack.c.h.b16 %v927
        %v966 = vunpack.c.l.b16 %v928
        %v967 = vunpack.c.l.b16 %v929
        %v968 = vunpack.c.h.b16 %v928
        %v969 = vunpack.c.h.b16 %v929
        %v970 = vunpack.c.l.b16 %v930
        %v971 = vunpack.c.l.b16 %v931
        %v972 = vunpack.c.h.b16 %v930
        %v973 = vunpack.c.h.b16 %v931
        %v974 = vunpack.c.l.b16 %v932
        %v975 = vunpack.c.l.b16 %v933
        %v976 = vunpack.c.h.b16 %v932
        %v977 = vunpack.c.h.b16 %v933
        %v978 = vunpack.c.l.b16 %v934
        %v979 = vunpack.c.l.b16 %v935
        %v980 = vunpack.c.h.b16 %v934
        %v981 = vunpack.c.h.b16 %v935
        %v982 = vunpack.c.l.b16 %v936
        %v983 = vunpack.c.l.b16 %v937
        %v984 = vunpack.c.h.b16 %v936
        %v985 = vunpack.c.h.b16 %v937
        %v986 = vpack.c.b16 %v955, %v954
        %v987 = vpack.c.b16 %v957, %v956
        %v988 = vpack.c.b16 %v959, %v958
        %v989 = vpack.c.b16 %v961, %v960
        %v990 = vpack.c.b16 %v963, %v962
        %v991 = vpack.c.b16 %v965, %v964
        %v992 = vpack.c.b16 %v967, %v966
        %v993 = vpack.c.b16 %v969, %v968
        %v994 = vpack.c.b16 %v971, %v970
        %v995 = vpack.c.b16 %v973, %v972
        %v996 = vpack.c.b16 %v975, %v974
        %v997 = vpack.c.b16 %v977, %v976
        %v998 = vpack.c.b16 %v979, %v978
        %v999 = vpack.c.b16 %v981, %v980
        %v1000 = vpack.c.b16 %v983, %v982
        %v1001 = vpack.c.b16 %v985, %v984
        %1018 = vst [vmem:[%s261] sm:$0xff] %v986
        %1019 = vst [vmem:[%s261 + $0x8] sm:$0xff] %v987
        %1020 = vst [vmem:[%s261 + $0x10] sm:$0xff] %v988
        %1021 = vst [vmem:[%s261 + $0x18] sm:$0xff] %v989
        %1022 = vst [vmem:[%s261 + $0x20] sm:$0xff] %v990
        %1023 = vst [vmem:[%s261 + $0x28] sm:$0xff] %v991
        %1024 = vst [vmem:[%s261 + $0x30] sm:$0xff] %v992
        %1025 = vst [vmem:[%s261 + $0x38] sm:$0xff] %v993
        %1026 = vst [vmem:[%s261 + $0x40] sm:$0xff] %v994
        %1027 = vst [vmem:[%s261 + $0x48] sm:$0xff] %v995
        %1028 = vst [vmem:[%s261 + $0x50] sm:$0xff] %v996
        %1029 = vst [vmem:[%s261 + $0x58] sm:$0xff] %v997
        %1030 = vst [vmem:[%s261 + $0x60] sm:$0xff] %v998
        %1031 = vst [vmem:[%s261 + $0x68] sm:$0xff] %v999
        %1032 = vst [vmem:[%s261 + $0x70] sm:$0xff] %v1000
        %1033 = vst [vmem:[%s261 + $0x78] sm:$0xff] %v1001
        %s1034 = sand.u32 %s164, 1
        %s1035 = scalar_lea.sflag [#allocation3], %s1034
        %s1036 = sand.u32 %s164, 1
        %s1037 = smul.addr %s1036, 128
        %s1038 = scalar_lea.vmem [#allocation2], %s1037
        // Predicated region
        $region45: #{generator_forward.1} parent=43 // pred_check
          %p1039 = pneg %p174
        $region46: #{generator_forward.1} parent=43 // pred_check_branch
          %1041 = sbr.rel (%p1039) target = $region48
        $region47: #{generator_forward.1} parent=43 // pred_region
          %s1042 = smul.u32 16, %s20
          %s1044 = ssub.s32 2048, 2048
          %1045 = vsyncadd %s1035, %s1044
          %s1046 = smul.addr %s1042, 2
          %s1047 = smul.addr %s1046, 64
          %s1048 = scalar_lea.hbm %s6, %s1047
          %s1049 = sshll.u32 %s1038, 4
          %s1050 = int_to_ptr.vmem [resolvable:$true] %s1049
          %1055 = dma.vmem_to_hbm [thread:$0]  %s1050, 2048, %s1048, %s1035, 128, 128, 8
        $region48: #{generator_forward.1} parent=43 // pred_fallthru
          _
      $region44: #{generator_forward.1} parent=5 // pred_fallthru
        _
      %p1056 = scmp.le.s32.totalorder 2, %s15
      // Predicated region
      $region49: #{generator_forward.1} parent=5 // pred_check
        %p1057 = pneg %p1056
      $region50: #{generator_forward.1} parent=5 // pred_check_branch
        %1059 = sbr.rel (%p1057) target = $region52
      $region51: #{generator_forward.1} parent=5 // pred_region
        %s1060 = ssub.s32 %s15, 2
        // Predicated region
        $region53: #{generator_forward.1} parent=51 // pred_check
          %p1061 = pneg %p180
        $region54: #{generator_forward.1} parent=51 // pred_check_branch
          %1063 = sbr.rel (%p1061) target = $region56
        $region55: #{generator_forward.1} parent=51 // pred_region
          %s1064 = sand.u32 %s165, 1
          %s1065 = scalar_lea.sflag [#allocation3], %s1064
          %s1066 = sand.u32 %s165, 1
          %s1067 = smul.addr %s1066, 128
          %s1068 = scalar_lea.vmem [#allocation2], %s1067
          %1069 = dma.done %s1065, 2048
        $region56: #{generator_forward.1} parent=51 // pred_fallthru
          _
      $region52: #{generator_forward.1} parent=5 // pred_fallthru
        _
    $region6: #{generator_forward.1} parent=1 // loop_footer
      %s19 = sadd.s32 1, %s15
    $region7: #{generator_forward.1} parent=1 // loop_footer_branch
      %14 = sbr.rel target = $region3
    $region8: #{generator_forward.1} parent=1 // loop_exit
      _
    %1070 = vsyncpa [#allocation3], 1
    %s1071 = scalar_lea.sflag [#allocation3], 1
    %1072 = vsyncpa %s1071, 1

</llo_original>
